<compile_context>
chip_gen: v6e
topology: v6e:2x2x1
jax: 0.10.0
libtpu: 0.0.40
codegen_flags: <defaults>
</compile_context>

<pallas_src>
import jax
import jax.numpy as jnp
from jax.experimental import pallas as pl
from jax.experimental.pallas import tpu as pltpu


def _add_pos_kernel(x_ref, pos_ref, o_ref):
    """Single full-block elementwise add.

    x_ref  : (Bt, N, D)  batch tile of the input (cls token at seq index 0)
    pos_ref: (N, D)      resident positional table (cls row at index 0)
    o_ref  : (Bt, N, D)
    """
    o_ref[...] = x_ref[...] + pos_ref[...][None, :, :]


def _choose_batch_tile(B, N, D, itemsize, vmem_budget_bytes, min_blocks=2):
    """Largest batch tile Bt (divisor of B) such that double-buffered x + out
    blocks plus the resident table fit in the VMEM budget, preferring >=
    min_blocks grid steps so the 'parallel' grid axis can be split across
    TensorCores (relevant on v7x)."""
    per_row = N * D * itemsize
    table_bytes = N * D * itemsize
    budget = max(vmem_budget_bytes - table_bytes, 4 * per_row)
    max_bt = max(1, budget // (4 * per_row))  # 2 bufs for x + 2 bufs for out
    divisors = [d for d in range(1, B + 1) if B % d == 0 and d <= max_bt]
    if not divisors:
        return 1
    preferred = [d for d in divisors if B // d >= min_blocks]
    return max(preferred) if preferred else max(divisors)


def disentangled_positional_encoder(x, row_embed, column_embed, cls_token_embed, grid,
                                    *, vmem_limit_bytes=32 << 20):
    """Pallas wrapper.

    x: (B, 1 + grid[0]*W, D), row_embed: (1, grid[1], D),
    column_embed: (1, grid[0], D), cls_token_embed: (1, 1, D).
    """
    B, N, D = x.shape
    G = grid[0]
    W = (N - 1) // G
    assert N == 1 + G * W, "sequence length (minus cls) must be divisible by grid[0]"
    assert W <= row_embed.shape[1], "row_embed too short for this sequence length"
    assert column_embed.shape[1] == G

    # --- hoisted positional table (built once, shared across the whole batch) ---
    # torch: row_embed[:, :W].repeat(1, G, 1) + column_embed.repeat_interleave(W, dim=1)
    row = row_embed[0, :W, :]        # (W, D)
    col = column_embed[0, :, :]      # (G, D)
    body = (row[None, :, :] + col[:, None, :]).reshape(G * W, D)          # (G*W, D)
    pos_table = jnp.concatenate([cls_token_embed[0], body], axis=0)       # (N, D)
    pos_table = pos_table.astype(x.dtype)  # keep the in-kernel add single-dtype

    itemsize = jnp.dtype(x.dtype).itemsize
    # Leave headroom inside the scoped limit for pipeline bookkeeping.
    bt = _choose_batch_tile(B, N, D, itemsize,
                            vmem_budget_bytes=(vmem_limit_bytes * 3) // 4)

    cost = pl.CostEstimate(
        flops=B * N * D,                                     # one add per element
        transcendentals=0,
        bytes_accessed=(2 * B * N * D + N * D) * itemsize,   # read x + table, write out
    )

    return pl.pallas_call(
        _add_pos_kernel,
        out_shape=jax.ShapeDtypeStruct((B, N, D), x.dtype),
        grid_spec=pltpu.PrefetchScalarGridSpec(
            num_scalar_prefetch=0,
            grid=(B // bt,),
            in_specs=[
                pl.BlockSpec((bt, N, D), lambda b: (b, 0, 0)),  # x: Bt batch rows / step
                pl.BlockSpec((N, D), lambda b: (0, 0)),         # positional table (resident)
            ],
            out_specs=pl.BlockSpec((bt, N, D), lambda b: (b, 0, 0)),
        ),
        compiler_params=pltpu.CompilerParams(
            dimension_semantics=("parallel",),
            vmem_limit_bytes=vmem_limit_bytes,
        ),
        cost_estimate=cost,
    )(x, pos_table)


def reference_forward(x, row_embed, column_embed, cls_token_embed, grid):
    """Pure-JAX transcription of DisentangledPositionalEncoder.forward
    (mode ('learned','learned'), use_cls_token=True)."""
    cls_tok = x[:, 0:1, :]
    body = x[:, 1:, :]
    G = grid[0]
    W = body.shape[1] // G
    row = jnp.tile(row_embed[:, :W, :], (1, G, 1))   # .repeat(1, G, 1)
    col = jnp.repeat(column_embed, W, axis=1)        # .repeat_interleave(W, dim=1)
    body = body + row + col
    cls_tok = cls_tok + cls_token_embed
    return jnp.concatenate([cls_tok, body], axis=1)


if __name__ == "__main__":
    # Small, TPU-friendly shapes consistent with the module's forward:
    B = 2
    D = 128                 # embed_dim (lane axis)
    grid = (4, 8)           # grid[0]=G columns, grid[1]=max rows
    W = grid[1]             # rows actually present -> body seq = G*W = 32
    N = 1 + grid[0] * W     # +1 for the cls token -> 33

    key = jax.random.PRNGKey(0)
    kx, kr, kc, kcls = jax.random.split(key, 4)

    x = jax.random.normal(kx, (B, N, D), dtype=jnp.float32)
    # The module zero-inits its learned params; use small random values so the
    # numerics are non-trivial while remaining deterministic.
    row_embed = 0.02 * jax.random.normal(kr, (1, grid[1], D), dtype=jnp.float32)
    column_embed = 0.02 * jax.random.normal(kc, (1, grid[0], D), dtype=jnp.float32)
    cls_token_embed = 0.02 * jax.random.normal(kcls, (1, 1, D), dtype=jnp.float32)

    out = disentangled_positional_encoder(x, row_embed, column_embed, cls_token_embed, grid)
    out = jax.block_until_ready(out)

    ref = reference_forward(x, row_embed, column_embed, cls_token_embed, grid)
    assert out.shape == ref.shape == (B, N, D)
    assert jnp.allclose(out, ref, atol=1e-6, rtol=1e-6), "mismatch vs pure-JAX reference"

    print("KERNEL_OK")
</pallas_src>

<mosaic_0001>
module attributes {stable_mosaic.version = 11 : i64} {
  func.func @_add_pos_kernel(%arg0: i32, %arg1: memref<1x33x128xf32, #tpu.memory_space<vmem>>, %arg2: memref<33x128xf32, #tpu.memory_space<vmem>>, %arg3: memref<1x33x128xf32, #tpu.memory_space<vmem>>) attributes {dimension_semantics = [#tpu.dimension_semantics<parallel>], iteration_bounds = array<i64: 2>, scalar_prefetch = 0 : i64, scratch_operands = 0 : i64, tpu.core_type = #tpu.core_type<tc>, window_params = [{transform_indices = @transform_0, window_bounds = array<i64: 1, 33, 128>}, {pipeline_mode = #tpu.pipeline_mode<synchronous>, transform_indices = @transform_1, window_bounds = array<i64: 33, 128>}, {transform_indices = @transform_2, window_bounds = array<i64: 1, 33, 128>}]} {
    %c0 = arith.constant 0 : index
    %c0_0 = arith.constant 0 : index
    %c0_1 = arith.constant 0 : index
    %0 = vector.load %arg1[%c0, %c0_0, %c0_1] : memref<1x33x128xf32, #tpu.memory_space<vmem>>, vector<1x33x128xf32>
    %c0_2 = arith.constant 0 : index
    %c0_3 = arith.constant 0 : index
    %1 = vector.load %arg2[%c0_2, %c0_3] : memref<33x128xf32, #tpu.memory_space<vmem>>, vector<33x128xf32>
    %2 = vector.shape_cast %1 : vector<33x128xf32> to vector<1x33x128xf32>
    %3 = arith.addf %0, %2 : vector<1x33x128xf32>
    %c0_4 = arith.constant 0 : index
    %c0_5 = arith.constant 0 : index
    %c0_6 = arith.constant 0 : index
    %4 = vector.load %arg3[%c0_4, %c0_5, %c0_6] : memref<1x33x128xf32, #tpu.memory_space<vmem>>, vector<1x33x128xf32>
    tpu.vector_store %arg3[%c0_4, %c0_5, %c0_6], %3 {strides = array<i32>} : memref<1x33x128xf32, #tpu.memory_space<vmem>>, vector<1x33x128xf32>,
    return
  }
  func.func @transform_0(%arg0: i32) -> (i32, i32, i32) {
    %c0_i32 = arith.constant 0 : i32
    %c0_i32_0 = arith.constant 0 : i32
    %c0_i32_1 = arith.constant 0 : i32
    return %arg0, %c0_i32, %c0_i32_0 : i32, i32, i32
  }
  func.func @transform_1(%arg0: i32) -> (i32, i32) {
    %c0_i32 = arith.constant 0 : i32
    %c0_i32_0 = arith.constant 0 : i32
    %c0_i32_1 = arith.constant 0 : i32
    return %c0_i32, %c0_i32_0 : i32, i32
  }
  func.func @transform_2(%arg0: i32) -> (i32, i32, i32) {
    %c0_i32 = arith.constant 0 : i32
    %c0_i32_0 = arith.constant 0 : i32
    %c0_i32_1 = arith.constant 0 : i32
    return %arg0, %c0_i32, %c0_i32_0 : i32, i32, i32
  }
}

</mosaic_0001>

<llo_original>
// kernel: tpu_custom_call.1
$region0: #{tpu_custom_call.1}
  #allocation0 [shape = 'u32[]', space=smem, size = 0x4, offset = 0x4, fixed_abs, tag = 'smem constant byte address 0x4 - core index']
  #allocation1 [shape = 'u32[144,128]{1,0:T(1,128)}', space=vmem, size = 0x12000, scoped, tag = 'internal scratch']
  %s0 = inlined_call_operand.vmem [shape: f32[2,33,128], index: 0, kind: input, shape index: {}]
  %s1 = inlined_call_operand.vmem [shape: f32[33,128], index: 1, kind: input, shape index: {}]
  %s2 = inlined_call_operand.vmem [shape: f32[2,33,128], index: 2, kind: output, shape index: {}]
  %s3 = sld [smem:[#allocation0]]
  $region41: #{tpu_custom_call.1} parent=0
    _
  %s5 = ssub.s32 1, %s3
  %s6 = scalar_select 0, %s5, %s3
  loop: start=0, step=1, limit=4
  $region2: #{tpu_custom_call.1} parent=0 // loop_pre_header
    _
  $region3: #{tpu_custom_call.1} parent=0 // loop_header
    %s8 = sphi 0, %s12
    %p9 = scmp.ge.s32.totalorder %s8, 4
    %s18 = sphi 0, %s20
    %s21 = sphi 0, %s18
    %s22 = sphi 0, %s21
    %s38 = sphi 0, %s22
    %s42 = sphi 0, %s42
    %s44 = sphi 0, %s42
    %s45 = sphi 0, %s44
    %s59 = sphi 0, %s45
    %s65 = sphi 0, %s67
    %s68 = sphi 0, %s65
    %s69 = sphi 0, %s68
    %s85 = sphi 0, %s69
  $region4: #{tpu_custom_call.1} parent=0 // loop_header_branch
    %11 = sbr.rel (%p9) target = $region8
  $region5: #{tpu_custom_call.1} parent=0 // loop_body
    %s13 = ssub.s32 %s8, 1
    %s14 = ssub.s32 %s8, 2
    %s15 = sadd.s32 %s8, 1
    %s16 = ssub.s32 %s8, %s15
    %p17 = scmp.eq.s32.totalorder %s16, 0
    %s19 = sadd.s32 %s18, 1
    %s20 = scalar_select %p17, %s18, %s19
    %p23 = pneg %p17
    %p24 = scmp.eq.s32.totalorder %s8, 1
    %p25 = por %p23, %p24
    %p26 = scmp.ne.s32.totalorder %s18, %s21
    %p27 = scmp.eq.s32.totalorder %s8, 0
    %p28 = por %p26, %p27
    %p29 = scmp.ne.s32.totalorder %s18, %s21
    %p30 = scmp.eq.s32.totalorder %s13, 1
    %p31 = por %p29, %p30
    %p32 = scmp.ne.s32.totalorder %s21, %s22
    %p33 = scmp.eq.s32.totalorder %s13, 0
    %p34 = por %p32, %p33
    %p35 = scmp.ne.s32.totalorder %s21, %s22
    %p36 = scmp.eq.s32.totalorder %s14, 1
    %p37 = por %p35, %p36
    %p39 = scmp.ne.s32.totalorder %s22, %s38
    %p40 = scmp.eq.s32.totalorder %s14, 0
    %p41 = por %p39, %p40
    %s43 = sadd.s32 %s42, 1
    %p46 = scmp.eq.s32.totalorder %s8, 1
    %p47 = scmp.ne.s32.totalorder %s42, %s44
    %p48 = scmp.eq.s32.totalorder %s8, 0
    %p49 = por %p47, %p48
    %p50 = scmp.ne.s32.totalorder %s42, %s44
    %p51 = scmp.eq.s32.totalorder %s13, 1
    %p52 = por %p50, %p51
    %p53 = scmp.ne.s32.totalorder %s44, %s45
    %p54 = scmp.eq.s32.totalorder %s13, 0
    %p55 = por %p53, %p54
    %p56 = scmp.ne.s32.totalorder %s44, %s45
    %p57 = scmp.eq.s32.totalorder %s14, 1
    %p58 = por %p56, %p57
    %p60 = scmp.ne.s32.totalorder %s45, %s59
    %p61 = scmp.eq.s32.totalorder %s14, 0
    %p62 = por %p60, %p61
    %s63 = ssub.s32 %s8, %s15
    %p64 = scmp.eq.s32.totalorder %s63, 0
    %s66 = sadd.s32 %s65, 1
    %s67 = scalar_select %p64, %s65, %s66
    %p70 = pneg %p64
    %p71 = scmp.eq.s32.totalorder %s8, 1
    %p72 = por %p70, %p71
    %p73 = scmp.ne.s32.totalorder %s65, %s68
    %p74 = scmp.eq.s32.totalorder %s8, 0
    %p75 = por %p73, %p74
    %p76 = scmp.ne.s32.totalorder %s65, %s68
    %p77 = scmp.eq.s32.totalorder %s13, 1
    %p78 = por %p76, %p77
    %p79 = scmp.ne.s32.totalorder %s68, %s69
    %p80 = scmp.eq.s32.totalorder %s13, 0
    %p81 = por %p79, %p80
    %p82 = scmp.ne.s32.totalorder %s68, %s69
    %p83 = scmp.eq.s32.totalorder %s14, 1
    %p84 = por %p82, %p83
    %p86 = scmp.ne.s32.totalorder %s69, %s85
    %p87 = scmp.eq.s32.totalorder %s14, 0
    %p88 = por %p86, %p87
    %p89 = scmp.le.s32.totalorder 1, %s8
    %p90 = scmp.lt.s32.totalorder %s8, 3
    %p91 = pnand %p89, %p90
    %p92 = pneg %p91
    // Predicated region
    $region9: #{tpu_custom_call.1} parent=5 // pred_check
      _
    $region10: #{tpu_custom_call.1} parent=5 // pred_check_branch
      %94 = sbr.rel (%p91) target = $region12
    $region11: #{tpu_custom_call.1} parent=5 // pred_region
      %s95 = ssub.s32 %s8, 1
      // Predicated region
      $region13: #{tpu_custom_call.1} parent=11 // pred_check
        %p96 = pneg %p55
      $region14: #{tpu_custom_call.1} parent=11 // pred_check_branch
        %98 = sbr.rel (%p96) target = $region16
      $region15: #{tpu_custom_call.1} parent=11 // pred_region
        _
      $region16: #{tpu_custom_call.1} parent=11 // pred_fallthru
        _
    $region12: #{tpu_custom_call.1} parent=5 // pred_fallthru
      _
    %p99 = scmp.lt.s32.totalorder %s8, 2
    // Predicated region
    $region17: #{tpu_custom_call.1} parent=5 // pred_check
      %p100 = pneg %p99
    $region18: #{tpu_custom_call.1} parent=5 // pred_check_branch
      %102 = sbr.rel (%p100) target = $region20
    $region19: #{tpu_custom_call.1} parent=5 // pred_region
      // Predicated region
      $region21: #{tpu_custom_call.1} parent=19 // pred_check
        %p103 = pneg %p28
      $region22: #{tpu_custom_call.1} parent=19 // pred_check_branch
        %105 = sbr.rel (%p103) target = $region24
      $region23: #{tpu_custom_call.1} parent=19 // pred_region
        %p106 = scmp.lt.s32.totalorder %s8, 1
        %s107 = scalar_select %p106, %s8, 1
        %s108 = smul.addr %s107, 5
        %s109 = smul.addr %s108, 8
        %s110 = scalar_lea.vmem %s0, %s109
      $region24: #{tpu_custom_call.1} parent=19 // pred_fallthru
        _
    $region20: #{tpu_custom_call.1} parent=5 // pred_fallthru
      _
    %p111 = scmp.le.s32.totalorder 1, %s8
    %p112 = scmp.lt.s32.totalorder %s8, 3
    %p113 = pnand %p111, %p112
    %p114 = pneg %p113
    // Predicated region
    $region25: #{tpu_custom_call.1} parent=5 // pred_check
      _
    $region26: #{tpu_custom_call.1} parent=5 // pred_check_branch
      %116 = sbr.rel (%p113) target = $region28
    $region27: #{tpu_custom_call.1} parent=5 // pred_region
      %s117 = ssub.s32 %s8, 1
      %p118 = scmp.lt.s32.totalorder %s13, 1
      %s119 = scalar_select %p118, %s13, 1
      %s120 = smul.addr %s119, 5
      %s121 = smul.addr %s120, 8
      %s122 = scalar_lea.vmem %s0, %s121
      %p123 = pneg %p34
      %p124 = pneg %p31
      %p125 = pneg %p55
      %p126 = pneg %p52
      %p127 = pneg %p81
      %p128 = pneg %p78
      %p129 = scmp.lt.s32.totalorder %s13, 1
      %s130 = scalar_select %p129, %s13, 1
      %s131 = smul.addr %s130, 5
      %s132 = smul.addr %s131, 8
      %s133 = scalar_lea.vmem %s2, %s132
      %p134 = scmp.lt.s32.totalorder %s13, 1
      %s135 = scalar_select %p134, %s13, 1
      %s136 = smul.addr %s135, 5
      %s137 = smul.addr %s136, 8
      %s138 = scalar_lea.vmem %s0, %s137
      %p139 = scmp.lt.s32.totalorder %s13, 1
      %s140 = scalar_select %p139, %s13, 1
      %s141 = smul.addr %s140, 5
      %s142 = smul.addr %s141, 8
      %s143 = scalar_lea.vmem %s2, %s142
      %v144 = vld [vmem:[%s138] sm:$0xff]
      %v145 = vld [vmem:[%s138 + $0x8] sm:$0xff]
      %v146 = vld [vmem:[%s138 + $0x10] sm:$0xff]
      %v147 = vld [vmem:[%s138 + $0x18] sm:$0xff]
      %v148 = vld [vmem:[%s138 + $0x20] sm:$0x1]
      %v149 = vld [vmem:[%s1] sm:$0xff]
      %v150 = vld [vmem:[%s1 + $0x8] sm:$0xff]
      %v151 = vld [vmem:[%s1 + $0x10] sm:$0xff]
      %v152 = vld [vmem:[%s1 + $0x18] sm:$0xff]
      %v153 = vld [vmem:[%s1 + $0x20] sm:$0x1]
      %v154 = vadd.f32 %v144, %v149
      %v155 = vadd.f32 %v145, %v150
      %v156 = vadd.f32 %v146, %v151
      %v157 = vadd.f32 %v147, %v152
      %v158 = vadd.f32 %v148, %v153
      %159 = vst [vmem:[%s143] sm:$0xff] %v154
      %160 = vst [vmem:[%s143 + $0x8] sm:$0xff] %v155
      %161 = vst [vmem:[%s143 + $0x10] sm:$0xff] %v156
      %162 = vst [vmem:[%s143 + $0x18] sm:$0xff] %v157
      %163 = vst [vmem:[%s143 + $0x20] sm:$0x1] %v158
      %p164 = scmp.lt.s32.totalorder %s13, 1
      %s165 = scalar_select %p164, %s13, 1
      %s166 = smul.addr %s165, 5
      %s167 = smul.addr %s166, 8
      %s168 = scalar_lea.vmem %s2, %s167
      // Predicated region
      $region29: #{tpu_custom_call.1} parent=27 // pred_check
        %p169 = pneg %p78
      $region30: #{tpu_custom_call.1} parent=27 // pred_check_branch
        %171 = sbr.rel (%p169) target = $region32
      $region31: #{tpu_custom_call.1} parent=27 // pred_region
        _
      $region32: #{tpu_custom_call.1} parent=27 // pred_fallthru
        _
    $region28: #{tpu_custom_call.1} parent=5 // pred_fallthru
      _
    %p172 = scmp.le.s32.totalorder 2, %s8
    // Predicated region
    $region33: #{tpu_custom_call.1} parent=5 // pred_check
      %p173 = pneg %p172
    $region34: #{tpu_custom_call.1} parent=5 // pred_check_branch
      %175 = sbr.rel (%p173) target = $region36
    $region35: #{tpu_custom_call.1} parent=5 // pred_region
      %s176 = ssub.s32 %s8, 2
      // Predicated region
      $region37: #{tpu_custom_call.1} parent=35 // pred_check
        %p177 = pneg %p84
      $region38: #{tpu_custom_call.1} parent=35 // pred_check_branch
        %179 = sbr.rel (%p177) target = $region40
      $region39: #{tpu_custom_call.1} parent=35 // pred_region
        %p180 = scmp.lt.s32.totalorder %s14, 1
        %s181 = scalar_select %p180, %s14, 1
        %s182 = smul.addr %s181, 5
        %s183 = smul.addr %s182, 8
        %s184 = scalar_lea.vmem %s2, %s183
      $region40: #{tpu_custom_call.1} parent=35 // pred_fallthru
        _
    $region36: #{tpu_custom_call.1} parent=5 // pred_fallthru
      _
  $region6: #{tpu_custom_call.1} parent=0 // loop_footer
    %s12 = sadd.s32 1, %s8
  $region7: #{tpu_custom_call.1} parent=0 // loop_footer_branch
    %7 = sbr.rel target = $region3
  $region8: #{tpu_custom_call.1} parent=0 // loop_exit
    _

</llo_original>
